<compile_context>
chip_gen: v5e
topology: v5e:2x2
jax: 0.10.0
libtpu: 0.0.40
codegen_flags: <defaults>
</compile_context>

<pallas_src>
import jax
import jax.numpy as jnp
from jax import lax
from jax.experimental import pallas as pl
from jax.experimental.pallas import tpu as pltpu


def _round_up(x, m):
    return (x + m - 1) // m * m


def _conv_bn_relu_pool_kernel(p_ref, w_ref, sh_ref, o_ref):
    # p_ref : (1, bm, 16*Cin)   bf16  stride-2 4x4 patches (one row per pooled output pixel)
    # w_ref : (16*Cin, 4*Cp)    bf16  BN-scale-folded weights; one (16*Cin, Cp) slab per 2x2
    #                                 pool position, 3x3 kernel scattered into the 4x4 window
    # sh_ref: (1, Cp)           f32   folded BatchNorm shift
    # o_ref : (1, bm, Cp)       f32   pooled output rows (Cp = Cout padded to a multiple of 128)
    cp = o_ref.shape[-1]
    # Single MXU matmul covers the conv for all four pool-window positions (shared LHS).
    z = jnp.dot(p_ref[0], w_ref[...], preferred_element_type=jnp.float32)   # (bm, 4*Cp) f32
    # 2x2 max-pool == elementwise max over the four lane-aligned Cp column groups (VPU).
    zmax = jnp.maximum(jnp.maximum(z[:, 0 * cp:1 * cp], z[:, 1 * cp:2 * cp]),
                       jnp.maximum(z[:, 2 * cp:3 * cp], z[:, 3 * cp:4 * cp]))
    # BN shift + ReLU in f32 (scale already folded into the weights). max/shift/ReLU commute
    # because the shift is identical across the four pool positions.
    o_ref[0] = jnp.maximum(zmax + sh_ref[...], 0.0).astype(o_ref.dtype)


def conv2d_block(x, w, gamma, beta, run_mean, run_var, *, eps=1e-5, block_m=512):
    """Conv2d(3x3, stride=1, pad=1, bias=False) + BatchNorm2d + ReLU + MaxPool2d(2).

    x: (N, Cin, H, W) float32 (NCHW), H and W even. Returns (N, Cout, H//2, W//2).
    """
    N, Cin, H, W = x.shape
    Cout = w.shape[0]
    assert H % 2 == 0 and W % 2 == 0, "MaxPool2d(2) path assumes even H, W"
    Hh, Wh = H // 2, W // 2
    M = Hh * Wh                 # pooled pixels per image
    K = 16 * Cin                # stride-2 4x4 patch features
    Cp = _round_up(Cout, 128)   # lane-dense output channels

    # ---- activations: pad + space-to-depth + 4-neighbour concat (no 9x im2col) ----
    x_nhwc = jnp.transpose(x, (0, 2, 3, 1))
    x_pad = jnp.pad(x_nhwc, ((0, 0), (1, 1), (1, 1), (0, 0)))           # (N, H+2, W+2, Cin)
    s2d = x_pad.reshape(N, Hh + 1, 2, Wh + 1, 2, Cin)
    s2d = jnp.transpose(s2d, (0, 1, 3, 2, 4, 5)).reshape(N, Hh + 1, Wh + 1, 4 * Cin)
    # patch feature order: (block_row, block_col, dr, dc, cin)
    patches = jnp.concatenate(
        [s2d[:, br:br + Hh, bc:bc + Wh, :] for br in (0, 1) for bc in (0, 1)],
        axis=-1).reshape(N, M, K)

    # spatial (pooled-row) tiling; size block_m to the VMEM budget (smaller on v7x: 64 MiB/TC)
    bm = min(block_m, _round_up(M, 8))
    bm = max(8, bm - bm % 8)
    Mp = _round_up(M, bm)
    if Mp != M:
        patches = jnp.pad(patches, ((0, 0), (0, Mp - M), (0, 0)))
    patches = patches.astype(jnp.bfloat16)

    # ---- weights: fold BN scale, pad Cout to 128 lanes, scatter per pool position ----
    scale = gamma / jnp.sqrt(run_var + eps)                             # (Cout,)
    shift = beta - run_mean * scale                                     # (Cout,)
    w_hwio = jnp.transpose(w, (2, 3, 1, 0)) * scale[None, None, None, :]
    w_hwio = jnp.pad(w_hwio, ((0, 0), (0, 0), (0, 0), (0, Cp - Cout)))  # (3, 3, Cin, Cp)
    # place the 3x3 kernel at offset (r, s) inside the 4x4 stride-2 patch window, one column
    # group per pool position
    w4 = jnp.concatenate(
        [jnp.pad(w_hwio, ((r, 1 - r), (s, 1 - s), (0, 0), (0, 0)))
         for r in (0, 1) for s in (0, 1)],
        axis=-1)                                                        # (4, 4, Cin, 4*Cp)
    # reorder rows (u, v, c) -> (block_row, block_col, dr, dc, c) to match the patch layout
    w_mat = jnp.transpose(w4.reshape(2, 2, 2, 2, Cin, 4 * Cp),
                          (0, 2, 1, 3, 4, 5)).reshape(K, 4 * Cp).astype(jnp.bfloat16)
    shift_p = jnp.pad(shift, (0, Cp - Cout)).reshape(1, Cp).astype(jnp.float32)

    grid = (N, Mp // bm)
    out = pl.pallas_call(
        _conv_bn_relu_pool_kernel,
        out_shape=jax.ShapeDtypeStruct((N, Mp, Cp), jnp.float32),
        grid=grid,
        in_specs=[
            pl.BlockSpec((1, bm, K), lambda n, m: (n, m, 0)),
            pl.BlockSpec((K, 4 * Cp), lambda n, m: (0, 0)),
            pl.BlockSpec((1, Cp), lambda n, m: (0, 0)),
        ],
        out_specs=pl.BlockSpec((1, bm, Cp), lambda n, m: (n, m, 0)),
        compiler_params=pltpu.CompilerParams(
            dimension_semantics=("parallel", "parallel")),
    )(patches, w_mat, shift_p)

    out = out[:, :M, :Cout].reshape(N, Hh, Wh, Cout)
    return jnp.transpose(out, (0, 3, 1, 2)).astype(x.dtype)


def _reference(x, w, gamma, beta, run_mean, run_var, eps=1e-5):
    y = lax.conv_general_dilated(
        x, w, window_strides=(1, 1), padding=((1, 1), (1, 1)),
        dimension_numbers=("NCHW", "OIHW", "NCHW"))
    inv = (gamma / jnp.sqrt(run_var + eps))[None, :, None, None]
    y = (y - run_mean[None, :, None, None]) * inv + beta[None, :, None, None]
    y = jnp.maximum(y, 0.0)
    y = lax.reduce_window(y, -jnp.inf, lax.max, (1, 1, 2, 2), (1, 1, 2, 2), "VALID")
    return y


if __name__ == "__main__":
    key = jax.random.PRNGKey(0)
    kx, kw, kg, kb, km, kv = jax.random.split(key, 6)
    N, Cin, Cout, H, W = 2, 4, 8, 16, 16

    x = jax.random.normal(kx, (N, Cin, H, W), jnp.float32)
    w = 0.1 * jax.random.normal(kw, (Cout, Cin, 3, 3), jnp.float32)
    gamma = jax.random.uniform(kg, (Cout,), jnp.float32, 0.5, 1.5)
    beta = 0.1 * jax.random.normal(kb, (Cout,), jnp.float32)
    run_mean = 0.1 * jax.random.normal(km, (Cout,), jnp.float32)
    run_var = jax.random.uniform(kv, (Cout,), jnp.float32, 0.5, 1.5)

    # block_m=32 -> grid (N=2, row_blocks=2): exercises the spatial grid axis / megacore path.
    out = conv2d_block(x, w, gamma, beta, run_mean, run_var, block_m=32)
    out = jax.block_until_ready(out)

    ref = _reference(x, w, gamma, beta, run_mean, run_var)
    assert out.shape == ref.shape == (N, Cout, H // 2, W // 2), (out.shape, ref.shape)
    err = float(jnp.max(jnp.abs(out - ref)))
    if err > 5e-2:   # bf16 matmul operands (f32 accumulate) vs f32 reference
        raise AssertionError(f"mismatch vs reference: max abs err {err}")
    print("KERNEL_OK")
</pallas_src>

<mosaic_0001>
module attributes {stable_mosaic.version = 11 : i64} {
  func.func @_conv_bn_relu_pool_kernel(%arg0: i32, %arg1: i32, %arg2: memref<1x32x64xbf16, #tpu.memory_space<vmem>>, %arg3: memref<64x512xbf16, #tpu.memory_space<vmem>>, %arg4: memref<1x128xf32, #tpu.memory_space<vmem>>, %arg5: memref<1x32x128xf32, #tpu.memory_space<vmem>>) attributes {dimension_semantics = [#tpu.dimension_semantics<parallel>, #tpu.dimension_semantics<parallel>], iteration_bounds = array<i64: 2, 2>, scalar_prefetch = 0 : i64, scratch_operands = 0 : i64, tpu.core_type = #tpu.core_type<tc>, window_params = [{transform_indices = @transform_0, window_bounds = array<i64: 1, 32, 64>}, {pipeline_mode = #tpu.pipeline_mode<synchronous>, transform_indices = @transform_1, window_bounds = array<i64: 64, 512>}, {pipeline_mode = #tpu.pipeline_mode<synchronous>, transform_indices = @transform_2, window_bounds = array<i64: 1, 128>}, {transform_indices = @transform_3, window_bounds = array<i64: 1, 32, 128>}]} {
    %c0 = arith.constant 0 : index
    %c0_0 = arith.constant 0 : index
    %c0_1 = arith.constant 0 : index
    %0 = vector.load %arg2[%c0, %c0_0, %c0_1] : memref<1x32x64xbf16, #tpu.memory_space<vmem>>, vector<1x32x64xbf16>
    %1 = vector.shape_cast %0 : vector<1x32x64xbf16> to vector<32x64xbf16>
    %c0_2 = arith.constant 0 : index
    %c0_3 = arith.constant 0 : index
    %2 = vector.load %arg3[%c0_2, %c0_3] : memref<64x512xbf16, #tpu.memory_space<vmem>>, vector<64x512xbf16>
    %cst = arith.constant dense<0.000000e+00> : vector<32x512xf32>
    %3 = tpu.matmul %1, %2, %cst {dimension_numbers = #tpu.dot_dimension_numbers<[1], [0], [0], [1], [0, 0, 1, 1], [], []>} : vector<32x64xbf16>, vector<64x512xbf16>, vector<32x512xf32> -> vector<32x512xf32>
    %4 = vector.extract_strided_slice %3 {offsets = [0, 0], sizes = [32, 128], strides = [1, 1]} : vector<32x512xf32> to vector<32x128xf32>
    %5 = vector.extract_strided_slice %3 {offsets = [0, 128], sizes = [32, 128], strides = [1, 1]} : vector<32x512xf32> to vector<32x128xf32>
    %6 = arith.maximumf %4, %5 : vector<32x128xf32>
    %7 = vector.extract_strided_slice %3 {offsets = [0, 256], sizes = [32, 128], strides = [1, 1]} : vector<32x512xf32> to vector<32x128xf32>
    %8 = vector.extract_strided_slice %3 {offsets = [0, 384], sizes = [32, 128], strides = [1, 1]} : vector<32x512xf32> to vector<32x128xf32>
    %9 = arith.maximumf %7, %8 : vector<32x128xf32>
    %10 = arith.maximumf %6, %9 : vector<32x128xf32>
    %c0_4 = arith.constant 0 : index
    %c0_5 = arith.constant 0 : index
    %11 = vector.load %arg4[%c0_4, %c0_5] : memref<1x128xf32, #tpu.memory_space<vmem>>, vector<1x128xf32>
    %12 = vector.broadcast %11 : vector<1x128xf32> to vector<32x128xf32>
    %13 = arith.addf %10, %12 : vector<32x128xf32>
    %cst_6 = arith.constant 0.000000e+00 : f32
    %14 = vector.broadcast %cst_6 : f32 to vector<32x128xf32>
    %15 = arith.maximumf %13, %14 : vector<32x128xf32>
    %c0_7 = arith.constant 0 : index
    %c0_8 = arith.constant 0 : index
    %c0_9 = arith.constant 0 : index
    %16 = vector.load %arg5[%c0_7, %c0_8, %c0_9] : memref<1x32x128xf32, #tpu.memory_space<vmem>>, vector<1x32x128xf32>
    %17 = vector.shape_cast %16 : vector<1x32x128xf32> to vector<32x128xf32>
    %18 = vector.shape_cast %15 : vector<32x128xf32> to vector<1x32x128xf32>
    tpu.vector_store %arg5[%c0_7, %c0_8, %c0_9], %18 {strides = array<i32>} : memref<1x32x128xf32, #tpu.memory_space<vmem>>, vector<1x32x128xf32>,
    return
  }
  func.func @transform_0(%arg0: i32, %arg1: i32) -> (i32, i32, i32) {
    %c0_i32 = arith.constant 0 : i32
    %c0_i32_0 = arith.constant 0 : i32
    return %arg0, %arg1, %c0_i32 : i32, i32, i32
  }
  func.func @transform_1(%arg0: i32, %arg1: i32) -> (i32, i32) {
    %c0_i32 = arith.constant 0 : i32
    %c0_i32_0 = arith.constant 0 : i32
    %c0_i32_1 = arith.constant 0 : i32
    return %c0_i32, %c0_i32_0 : i32, i32
  }
  func.func @transform_2(%arg0: i32, %arg1: i32) -> (i32, i32) {
    %c0_i32 = arith.constant 0 : i32
    %c0_i32_0 = arith.constant 0 : i32
    %c0_i32_1 = arith.constant 0 : i32
    return %c0_i32, %c0_i32_0 : i32, i32
  }
  func.func @transform_3(%arg0: i32, %arg1: i32) -> (i32, i32, i32) {
    %c0_i32 = arith.constant 0 : i32
    %c0_i32_0 = arith.constant 0 : i32
    return %arg0, %arg1, %c0_i32 : i32, i32, i32
  }
}

</mosaic_0001>

<llo_original>
// kernel: tpu_custom_call.1
$region0: #{tpu_custom_call.1}
  #allocation0 [shape = 'u32[]', space=smem, size = 0x4, offset = 0x4, fixed_abs, tag = 'smem constant byte address 0x4 - core index']
  #allocation1 [shape = 'u32[72,128]{1,0:T(1,128)}', space=vmem, size = 0x9000, scoped, tag = 'internal scratch']
  %s0 = inlined_call_operand.hbm [shape: bf16[2,64,64], index: 0, kind: input, shape index: {}]
  %s1 = inlined_call_operand.hbm [shape: bf16[64,512], index: 1, kind: input, shape index: {}]
  %s2 = inlined_call_operand.vmem [shape: f32[1,128], index: 2, kind: input, shape index: {}]
  %s3 = inlined_call_operand.hbm [shape: f32[2,64,128], index: 3, kind: output, shape index: {}]
  %s4 = sld [smem:[#allocation0]]
  $region53: #{tpu_custom_call.1} parent=0
    _
  %s6 = ssub.s32 1, %s4
  %s7 = scalar_select 0, %s6, %s4
  $region1: #{tpu_custom_call.1} parent=0
    #allocation2 [shape = 'u8[16384]{0}', space=vmem, size = 0x4000, scoped, tag = 'input window, operand 0']
    #allocation3 [shape = 's32[2]{0}', space=sflag, size = 0x8, scoped, tag = 'scoped memory for tpu_custom_call.1']
    #allocation4 [shape = 's32[2]{0}', space=sflag, size = 0x8, scoped, tag = 'scoped memory for tpu_custom_call.1']
    #allocation5 [shape = 'u8[65536]{0}', space=vmem, size = 0x10000, scoped, tag = 'input window, operand 1, single buffered']
    #allocation6 [shape = 's32[1]{0}', space=sflag, size = 0x4, scoped, tag = 'scoped memory for tpu_custom_call.1']
    #allocation7 [shape = 'u8[32768]{0}', space=vmem, size = 0x8000, scoped, tag = 'output window, operand 0']
    %8 = vsyncpa [#allocation3], 0
    %s9 = scalar_lea.sflag [#allocation3], 1
    %10 = vsyncpa %s9, 0
    %11 = vsyncpa [#allocation6], 0
    %12 = vsyncpa [#allocation4], 0
    %s13 = scalar_lea.sflag [#allocation4], 1
    %14 = vsyncpa %s13, 0
    loop: start=0, step=1, limit=6
    $region2: #{tpu_custom_call.1} parent=1 // loop_pre_header
      _
    $region3: #{tpu_custom_call.1} parent=1 // loop_header
      %s16 = sphi 0, %s20
      %p17 = scmp.ge.s32.totalorder %s16, 6
      %s23 = sphi 0, %s35
      %s24 = sphi 0, %s31
      %s25 = sphi 0, %s23
      %s26 = sphi 0, %s24
      %s27 = sphi 0, %s25
      %s28 = sphi 0, %s26
      %s40 = sphi 0, %s42
      %s43 = sphi 0, %s40
      %s44 = sphi 0, %s43
      %s60 = sphi 0, %s44
      %s64 = sphi 0, %s64
      %s66 = sphi 0, %s64
      %s67 = sphi 0, %s66
      %s81 = sphi 0, %s67
      %s85 = sphi 0, %s85
      %s87 = sphi 0, %s85
      %s88 = sphi 0, %s87
      %s102 = sphi 0, %s88
      %s110 = sphi 0, %s112
      %s113 = sphi 0, %s110
      %s114 = sphi 0, %s113
      %s130 = sphi 0, %s114
    $region4: #{tpu_custom_call.1} parent=1 // loop_header_branch
      %19 = sbr.rel (%p17) target = $region8
    $region5: #{tpu_custom_call.1} parent=1 // loop_body
      %s21 = ssub.s32 %s16, 1
      %s22 = ssub.s32 %s16, 2
      %s29 = sadd.s32 1, %s24
      %p30 = scmp.ge.s32.totalorder %s29, 2
      %s31 = scalar_select %p30, 0, %s29
      %s32 = sadd.s32 1, %s23
      %s33 = scalar_select %p30, %s32, %s23
      %p34 = scmp.ge.s32.totalorder %s33, 2
      %s35 = scalar_select %p34, 0, %s33
      %s36 = ssub.s32 %s23, %s35
      %s37 = ssub.s32 %s24, %s31
      %s38 = sor.u32 %s36, %s37
      %p39 = scmp.eq.s32.totalorder %s38, 0
      %s41 = sadd.s32 %s40, 1
      %s42 = scalar_select %p39, %s40, %s41
      %p45 = pneg %p39
      %p46 = scmp.eq.s32.totalorder %s16, 3
      %p47 = por %p45, %p46
      %p48 = scmp.ne.s32.totalorder %s40, %s43
      %p49 = scmp.eq.s32.totalorder %s16, 0
      %p50 = por %p48, %p49
      %p51 = scmp.ne.s32.totalorder %s40, %s43
      %p52 = scmp.eq.s32.totalorder %s21, 3
      %p53 = por %p51, %p52
      %p54 = scmp.ne.s32.totalorder %s43, %s44
      %p55 = scmp.eq.s32.totalorder %s21, 0
      %p56 = por %p54, %p55
      %p57 = scmp.ne.s32.totalorder %s43, %s44
      %p58 = scmp.eq.s32.totalorder %s22, 3
      %p59 = por %p57, %p58
      %p61 = scmp.ne.s32.totalorder %s44, %s60
      %p62 = scmp.eq.s32.totalorder %s22, 0
      %p63 = por %p61, %p62
      %s65 = sadd.s32 %s64, 1
      %p68 = scmp.eq.s32.totalorder %s16, 3
      %p69 = scmp.ne.s32.totalorder %s64, %s66
      %p70 = scmp.eq.s32.totalorder %s16, 0
      %p71 = por %p69, %p70
      %p72 = scmp.ne.s32.totalorder %s64, %s66
      %p73 = scmp.eq.s32.totalorder %s21, 3
      %p74 = por %p72, %p73
      %p75 = scmp.ne.s32.totalorder %s66, %s67
      %p76 = scmp.eq.s32.totalorder %s21, 0
      %p77 = por %p75, %p76
      %p78 = scmp.ne.s32.totalorder %s66, %s67
      %p79 = scmp.eq.s32.totalorder %s22, 3
      %p80 = por %p78, %p79
      %p82 = scmp.ne.s32.totalorder %s67, %s81
      %p83 = scmp.eq.s32.totalorder %s22, 0
      %p84 = por %p82, %p83
      %s86 = sadd.s32 %s85, 1
      %p89 = scmp.eq.s32.totalorder %s16, 3
      %p90 = scmp.ne.s32.totalorder %s85, %s87
      %p91 = scmp.eq.s32.totalorder %s16, 0
      %p92 = por %p90, %p91
      %p93 = scmp.ne.s32.totalorder %s85, %s87
      %p94 = scmp.eq.s32.totalorder %s21, 3
      %p95 = por %p93, %p94
      %p96 = scmp.ne.s32.totalorder %s87, %s88
      %p97 = scmp.eq.s32.totalorder %s21, 0
      %p98 = por %p96, %p97
      %p99 = scmp.ne.s32.totalorder %s87, %s88
      %p100 = scmp.eq.s32.totalorder %s22, 3
      %p101 = por %p99, %p100
      %p103 = scmp.ne.s32.totalorder %s88, %s102
      %p104 = scmp.eq.s32.totalorder %s22, 0
      %p105 = por %p103, %p104
      %s106 = ssub.s32 %s23, %s35
      %s107 = ssub.s32 %s24, %s31
      %s108 = sor.u32 %s106, %s107
      %p109 = scmp.eq.s32.totalorder %s108, 0
      %s111 = sadd.s32 %s110, 1
      %s112 = scalar_select %p109, %s110, %s111
      %p115 = pneg %p109
      %p116 = scmp.eq.s32.totalorder %s16, 3
      %p117 = por %p115, %p116
      %p118 = scmp.ne.s32.totalorder %s110, %s113
      %p119 = scmp.eq.s32.totalorder %s16, 0
      %p120 = por %p118, %p119
      %p121 = scmp.ne.s32.totalorder %s110, %s113
      %p122 = scmp.eq.s32.totalorder %s21, 3
      %p123 = por %p121, %p122
      %p124 = scmp.ne.s32.totalorder %s113, %s114
      %p125 = scmp.eq.s32.totalorder %s21, 0
      %p126 = por %p124, %p125
      %p127 = scmp.ne.s32.totalorder %s113, %s114
      %p128 = scmp.eq.s32.totalorder %s22, 3
      %p129 = por %p127, %p128
      %p131 = scmp.ne.s32.totalorder %s114, %s130
      %p132 = scmp.eq.s32.totalorder %s22, 0
      %p133 = por %p131, %p132
      %p134 = scmp.le.s32.totalorder 1, %s16
      %p135 = scmp.lt.s32.totalorder %s16, 5
      %p136 = pnand %p134, %p135
      %p137 = pneg %p136
      // Predicated region
      $region9: #{tpu_custom_call.1} parent=5 // pred_check
        _
      $region10: #{tpu_custom_call.1} parent=5 // pred_check_branch
        %139 = sbr.rel (%p136) target = $region12
      $region11: #{tpu_custom_call.1} parent=5 // pred_region
        %s140 = ssub.s32 %s16, 1
        // Predicated region
        $region13: #{tpu_custom_call.1} parent=11 // pred_check
          %p141 = pneg %p77
        $region14: #{tpu_custom_call.1} parent=11 // pred_check_branch
          %143 = sbr.rel (%p141) target = $region16
        $region15: #{tpu_custom_call.1} parent=11 // pred_region
          %145 = vsyncadd [#allocation6], 0
          %s146 = sshll.u32 %s1, 4
          %s147 = int_to_ptr.hbm [resolvable:$true] %s146
          %s148 = sshll.u32 [#allocation5], 4
          %s149 = int_to_ptr.vmem [resolvable:$true] %s148
          %154 = dma.hbm_to_vmem [thread:$0]  %s147, 2048, %s149, [#allocation6], 256, 256, 16
        $region16: #{tpu_custom_call.1} parent=11 // pred_fallthru
          _
        // Predicated region
        $region17: #{tpu_custom_call.1} parent=11 // pred_check
          %p155 = pneg %p98
        $region18: #{tpu_custom_call.1} parent=11 // pred_check_branch
          %157 = sbr.rel (%p155) target = $region20
        $region19: #{tpu_custom_call.1} parent=11 // pred_region
          _
        $region20: #{tpu_custom_call.1} parent=11 // pred_fallthru
          _
      $region12: #{tpu_custom_call.1} parent=5 // pred_fallthru
        _
      %p158 = scmp.lt.s32.totalorder %s16, 4
      // Predicated region
      $region21: #{tpu_custom_call.1} parent=5 // pred_check
        %p159 = pneg %p158
      $region22: #{tpu_custom_call.1} parent=5 // pred_check_branch
        %161 = sbr.rel (%p159) target = $region24
      $region23: #{tpu_custom_call.1} parent=5 // pred_region
        // Predicated region
        $region25: #{tpu_custom_call.1} parent=23 // pred_check
          %p162 = pneg %p50
        $region26: #{tpu_custom_call.1} parent=23 // pred_check_branch
          %164 = sbr.rel (%p162) target = $region28
        $region27: #{tpu_custom_call.1} parent=23 // pred_region
          %s165 = sand.u32 %s40, 1
          %s166 = scalar_lea.sflag [#allocation3], %s165
          %s167 = sand.u32 %s40, 1
          %s168 = smul.addr %s167, 16
          %s169 = scalar_lea.vmem [#allocation2], %s168
          %s170 = smul.u32 4, %s24
          %172 = vsyncadd %s166, 0
          %s173 = smul.addr %s23, 8
          %s174 = sadd.s32 %s170, %s173
          %s175 = smul.addr %s174, 4
          %s176 = scalar_lea.hbm %s0, %s175
          %s177 = sshll.u32 %s176, 4
          %s178 = int_to_ptr.hbm [resolvable:$true] %s177
          %s179 = sshll.u32 %s169, 4
          %s180 = int_to_ptr.vmem [resolvable:$true] %s179
          %185 = dma.hbm_to_vmem [thread:$0]  %s178, 256, %s180, %s166, 64, 64, 4
        $region28: #{tpu_custom_call.1} parent=23 // pred_fallthru
          _
      $region24: #{tpu_custom_call.1} parent=5 // pred_fallthru
        _
      %p186 = scmp.le.s32.totalorder 1, %s16
      %p187 = scmp.lt.s32.totalorder %s16, 5
      %p188 = pnand %p186, %p187
      %p189 = pneg %p188
      // Predicated region
      $region29: #{tpu_custom_call.1} parent=5 // pred_check
        _
      $region30: #{tpu_custom_call.1} parent=5 // pred_check_branch
        %191 = sbr.rel (%p188) target = $region32
      $region31: #{tpu_custom_call.1} parent=5 // pred_region
        %s192 = ssub.s32 %s16, 1
        %s193 = sand.u32 %s43, 1
        %s194 = scalar_lea.sflag [#allocation3], %s193
        %s195 = sand.u32 %s43, 1
        %s196 = smul.addr %s195, 16
        %s197 = scalar_lea.vmem [#allocation2], %s196
        // Predicated region
        $region33: #{tpu_custom_call.1} parent=31 // pred_check
          %p198 = pneg %p56
        $region34: #{tpu_custom_call.1} parent=31 // pred_check_branch
          %200 = sbr.rel (%p198) target = $region36
        $region35: #{tpu_custom_call.1} parent=31 // pred_region
          %202 = dma.done %s194, 256
        $region36: #{tpu_custom_call.1} parent=31 // pred_fallthru
          _
        // Predicated region
        $region37: #{tpu_custom_call.1} parent=31 // pred_check
          %p203 = pneg %p77
        $region38: #{tpu_custom_call.1} parent=31 // pred_check_branch
          %205 = sbr.rel (%p203) target = $region40
        $region39: #{tpu_custom_call.1} parent=31 // pred_region
          %207 = dma.done [#allocation6], 2048
        $region40: #{tpu_custom_call.1} parent=31 // pred_fallthru
          _
        %s208 = sand.u32 %s43, 1
        %s209 = scalar_lea.sflag [#allocation3], %s208
        %s210 = sand.u32 %s43, 1
        %s211 = smul.addr %s210, 16
        %s212 = scalar_lea.vmem [#allocation2], %s211
        %p213 = pneg %p56
        %p214 = pneg %p53
        %p215 = pneg %p77
        %p216 = pneg %p74
        %p217 = pneg %p98
        %p218 = pneg %p95
        %p219 = pneg %p126
        %p220 = pneg %p123
        %s221 = sand.u32 %s113, 1
        %s222 = scalar_lea.sflag [#allocation4], %s221
        %s223 = sand.u32 %s113, 1
        %s224 = smul.addr %s223, 32
        %s225 = scalar_lea.vmem [#allocation7], %s224
        %s226 = smul.u32 4, %s26
        %s227 = smul.u32 4, %s26
        %v229 = vld [vmem:[%s197] sm:$0xf]
        %v230 = vld [vmem:[%s197 + $0x4] sm:$0xf]
        %v231 = vld [vmem:[%s197 + $0x8] sm:$0xf]
        %v232 = vld [vmem:[%s197 + $0xc] sm:$0xf]
        %v233 = vld [vmem:[#allocation5] sm:$0xff]
        %v234 = vld [vmem:[#allocation5 + $0x8] sm:$0xff]
        %v235 = vld [vmem:[#allocation5 + $0x10] sm:$0xff]
        %v236 = vld [vmem:[#allocation5 + $0x18] sm:$0xff]
        %v237 = vld [vmem:[#allocation5 + $0x20] sm:$0xff]
        %v238 = vld [vmem:[#allocation5 + $0x28] sm:$0xff]
        %v239 = vld [vmem:[#allocation5 + $0x30] sm:$0xff]
        %v240 = vld [vmem:[#allocation5 + $0x38] sm:$0xff]
        %v241 = vld [vmem:[#allocation5 + $0x40] sm:$0xff]
        %v242 = vld [vmem:[#allocation5 + $0x48] sm:$0xff]
        %v243 = vld [vmem:[#allocation5 + $0x50] sm:$0xff]
        %v244 = vld [vmem:[#allocation5 + $0x58] sm:$0xff]
        %v245 = vld [vmem:[#allocation5 + $0x60] sm:$0xff]
        %v246 = vld [vmem:[#allocation5 + $0x68] sm:$0xff]
        %v247 = vld [vmem:[#allocation5 + $0x70] sm:$0xff]
        %v248 = vld [vmem:[#allocation5 + $0x78] sm:$0xff]
        %v253 = vunpack.c.l.b16 %v229
        %v254 = vunpack.c.l.b16 %v230
        %v255 = vunpack.c.l.b16 %v231
        %v256 = vunpack.c.l.b16 %v232
        %v257 = vpack.c.b16 %v254, %v253
        %v258 = vpack.c.b16 %v256, %v255
        %v275 = vunpack.c.l.b16 %v233
        %v276 = vunpack.c.h.b16 %v233
        %v277 = vunpack.c.l.b16 %v234
        %v278 = vunpack.c.h.b16 %v234
        %v279 = vunpack.c.l.b16 %v235
        %v280 = vunpack.c.h.b16 %v235
        %v281 = vunpack.c.l.b16 %v236
        %v282 = vunpack.c.h.b16 %v236
        %v283 = vunpack.c.l.b16 %v237
        %v284 = vunpack.c.h.b16 %v237
        %v285 = vunpack.c.l.b16 %v238
        %v286 = vunpack.c.h.b16 %v238
        %v287 = vunpack.c.l.b16 %v239
        %v288 = vunpack.c.h.b16 %v239
        %v289 = vunpack.c.l.b16 %v240
        %v290 = vunpack.c.h.b16 %v240
        %v291 = vunpack.c.l.b16 %v241
        %v292 = vunpack.c.h.b16 %v241
        %v293 = vunpack.c.l.b16 %v242
        %v294 = vunpack.c.h.b16 %v242
        %v295 = vunpack.c.l.b16 %v243
        %v296 = vunpack.c.h.b16 %v243
        %v297 = vunpack.c.l.b16 %v244
        %v298 = vunpack.c.h.b16 %v244
        %v299 = vunpack.c.l.b16 %v245
        %v300 = vunpack.c.h.b16 %v245
        %v301 = vunpack.c.l.b16 %v246
        %v302 = vunpack.c.h.b16 %v246
        %v303 = vunpack.c.l.b16 %v247
        %v304 = vunpack.c.h.b16 %v247
        %v305 = vunpack.c.l.b16 %v248
        %v306 = vunpack.c.h.b16 %v248
        %v307 = vpack.c.b16 %v279, %v275
        %v308 = vpack.c.b16 %v280, %v276
        %v309 = vpack.c.b16 %v281, %v277
        %v310 = vpack.c.b16 %v282, %v278
        %v311 = vpack.c.b16 %v287, %v283
        %v312 = vpack.c.b16 %v288, %v284
        %v313 = vpack.c.b16 %v289, %v285
        %v314 = vpack.c.b16 %v290, %v286
        %v315 = vpack.c.b16 %v295, %v291
        %v316 = vpack.c.b16 %v296, %v292
        %v317 = vpack.c.b16 %v297, %v293
        %v318 = vpack.c.b16 %v298, %v294
        %v319 = vpack.c.b16 %v303, %v299
        %v320 = vpack.c.b16 %v304, %v300
        %v321 = vpack.c.b16 %v305, %v301
        %v322 = vpack.c.b16 %v306, %v302
        %vm339 = vcmask 523264
        %v341 = vsel %vm339, %v257, 0
        %v344 = vsel %vm339, %v258, 0
        %346 = vmatpush.bf16.msra.mxu0 0
        %347 = vmatpush.bf16.msra.mxu0 0
        %348 = vmatpush.bf16.msra.mxu0 0
        %349 = vmatpush.bf16.msra.mxu0 0
        %350 = vmatpush.bf16.msra.mxu0 %v319
        %351 = vmatpush.bf16.msra.mxu0 %v315
        %352 = vmatpush.bf16.msra.mxu0 %v311
        %353 = vmatpush.bf16.msra.mxu0 %v307
        %354 = vmatmul.bf16.gmra.mxu0 %v341
        %v355 = vpop.f32.mrf.mxu0
        %v356 = vadd.f32 0.0, %v355
        %v357 = vpop.f32.mrf.mxu0
        %v358 = vadd.f32 0.0, %v357
        %359 = vmatmul.bf16.gmra.mxu0 %v344
        %v360 = vpop.f32.mrf.mxu0
        %v361 = vadd.f32 0.0, %v360
        %v362 = vpop.f32.mrf.mxu0
        %v363 = vadd.f32 0.0, %v362
        %364 = vdwg.mxu0
        %365 = vmatpush.bf16.msra.mxu0 0
        %366 = vmatpush.bf16.msra.mxu0 0
        %367 = vmatpush.bf16.msra.mxu0 0
        %368 = vmatpush.bf16.msra.mxu0 0
        %369 = vmatpush.bf16.msra.mxu0 %v320
        %370 = vmatpush.bf16.msra.mxu0 %v316
        %371 = vmatpush.bf16.msra.mxu0 %v312
        %372 = vmatpush.bf16.msra.mxu0 %v308
        %373 = vmatmul.bf16.gmra.mxu0 %v341
        %v374 = vpop.f32.mrf.mxu0
        %v375 = vadd.f32 0.0, %v374
        %v376 = vpop.f32.mrf.mxu0
        %v377 = vadd.f32 0.0, %v376
        %378 = vmatmul.bf16.gmra.mxu0 %v344
        %v379 = vpop.f32.mrf.mxu0
        %v380 = vadd.f32 0.0, %v379
        %v381 = vpop.f32.mrf.mxu0
        %v382 = vadd.f32 0.0, %v381
        %383 = vdwg.mxu0
        %384 = vmatpush.bf16.msra.mxu0 0
        %385 = vmatpush.bf16.msra.mxu0 0
        %386 = vmatpush.bf16.msra.mxu0 0
        %387 = vmatpush.bf16.msra.mxu0 0
        %388 = vmatpush.bf16.msra.mxu0 %v321
        %389 = vmatpush.bf16.msra.mxu0 %v317
        %390 = vmatpush.bf16.msra.mxu0 %v313
        %391 = vmatpush.bf16.msra.mxu0 %v309
        %392 = vmatmul.bf16.gmra.mxu0 %v341
        %v393 = vpop.f32.mrf.mxu0
        %v394 = vadd.f32 0.0, %v393
        %v395 = vpop.f32.mrf.mxu0
        %v396 = vadd.f32 0.0, %v395
        %397 = vmatmul.bf16.gmra.mxu0 %v344
        %v398 = vpop.f32.mrf.mxu0
        %v399 = vadd.f32 0.0, %v398
        %v400 = vpop.f32.mrf.mxu0
        %v401 = vadd.f32 0.0, %v400
        %402 = vdwg.mxu0
        %403 = vmatpush.bf16.msra.mxu0 0
        %404 = vmatpush.bf16.msra.mxu0 0
        %405 = vmatpush.bf16.msra.mxu0 0
        %406 = vmatpush.bf16.msra.mxu0 0
        %407 = vmatpush.bf16.msra.mxu0 %v322
        %408 = vmatpush.bf16.msra.mxu0 %v318
        %409 = vmatpush.bf16.msra.mxu0 %v314
        %410 = vmatpush.bf16.msra.mxu0 %v310
        %411 = vmatmul.bf16.gmra.mxu0 %v341
        %v412 = vpop.f32.mrf.mxu0
        %v413 = vadd.f32 0.0, %v412
        %v414 = vpop.f32.mrf.mxu0
        %v415 = vadd.f32 0.0, %v414
        %416 = vmatmul.bf16.gmra.mxu0 %v344
        %v417 = vpop.f32.mrf.mxu0
        %v418 = vadd.f32 0.0, %v417
        %v419 = vpop.f32.mrf.mxu0
        %v420 = vadd.f32 0.0, %v419
        %421 = vdwg.mxu0
        %v422 = vmax.f32 %v356, %v375
        %v423 = vmax.f32 %v358, %v377
        %v424 = vmax.f32 %v361, %v380
        %v425 = vmax.f32 %v363, %v382
        %v426 = vmax.f32 %v394, %v413
        %v427 = vmax.f32 %v396, %v415
        %v428 = vmax.f32 %v399, %v418
        %v429 = vmax.f32 %v401, %v420
        %v430 = vmax.f32 %v422, %v426
        %v431 = vmax.f32 %v423, %v427
        %v432 = vmax.f32 %v424, %v428
        %v433 = vmax.f32 %v425, %v429
        %v434 = vld [vmem:[%s2] sm:$0x1]
        %v436 = vperm.slane %v434, 0
        %v438 = vadd.f32 %v430, %v436
        %v439 = vadd.f32 %v431, %v436
        %v440 = vadd.f32 %v432, %v436
        %v441 = vadd.f32 %v433, %v436
        %v442 = vmax.f32 %v438, 0.0
        %v443 = vmax.f32 %v439, 0.0
        %v444 = vmax.f32 %v440, 0.0
        %v445 = vmax.f32 %v441, 0.0
        %446 = vst [vmem:[%s225] sm:$0xff] %v442
        %447 = vst [vmem:[%s225 + $0x8] sm:$0xff] %v443
        %448 = vst [vmem:[%s225 + $0x10] sm:$0xff] %v444
        %449 = vst [vmem:[%s225 + $0x18] sm:$0xff] %v445
        %s450 = sand.u32 %s113, 1
        %s451 = scalar_lea.sflag [#allocation4], %s450
        %s452 = sand.u32 %s113, 1
        %s453 = smul.addr %s452, 32
        %s454 = scalar_lea.vmem [#allocation7], %s453
        // Predicated region
        $region41: #{tpu_custom_call.1} parent=31 // pred_check
          %p455 = pneg %p123
        $region42: #{tpu_custom_call.1} parent=31 // pred_check_branch
          %457 = sbr.rel (%p455) target = $region44
        $region43: #{tpu_custom_call.1} parent=31 // pred_region
          %s458 = smul.u32 4, %s26
          %460 = vsyncadd %s451, 0
          %s461 = smul.addr %s25, 8
          %s462 = sadd.s32 %s458, %s461
          %s463 = smul.addr %s462, 8
          %s464 = scalar_lea.hbm %s3, %s463
          %s465 = sshll.u32 %s454, 4
          %s466 = int_to_ptr.vmem [resolvable:$true] %s465
          %s467 = sshll.u32 %s464, 4
          %s468 = int_to_ptr.hbm [resolvable:$true] %s467
          %473 = dma.vmem_to_hbm [thread:$0]  %s466, 512, %s468, %s451, 128, 128, 8
        $region44: #{tpu_custom_call.1} parent=31 // pred_fallthru
          _
      $region32: #{tpu_custom_call.1} parent=5 // pred_fallthru
        _
      %p474 = scmp.le.s32.totalorder 2, %s16
      // Predicated region
      $region45: #{tpu_custom_call.1} parent=5 // pred_check
        %p475 = pneg %p474
      $region46: #{tpu_custom_call.1} parent=5 // pred_check_branch
        %477 = sbr.rel (%p475) target = $region48
      $region47: #{tpu_custom_call.1} parent=5 // pred_region
        %s478 = ssub.s32 %s16, 2
        // Predicated region
        $region49: #{tpu_custom_call.1} parent=47 // pred_check
          %p479 = pneg %p129
        $region50: #{tpu_custom_call.1} parent=47 // pred_check_branch
          %481 = sbr.rel (%p479) target = $region52
        $region51: #{tpu_custom_call.1} parent=47 // pred_region
          %s482 = sand.u32 %s114, 1
          %s483 = scalar_lea.sflag [#allocation4], %s482
          %s484 = sand.u32 %s114, 1
          %s485 = smul.addr %s484, 32
          %s486 = scalar_lea.vmem [#allocation7], %s485
          %488 = dma.done %s483, 512
        $region52: #{tpu_custom_call.1} parent=47 // pred_fallthru
          _
      $region48: #{tpu_custom_call.1} parent=5 // pred_fallthru
        _
    $region6: #{tpu_custom_call.1} parent=1 // loop_footer
      %s20 = sadd.s32 1, %s16
    $region7: #{tpu_custom_call.1} parent=1 // loop_footer_branch
      %15 = sbr.rel target = $region3
    $region8: #{tpu_custom_call.1} parent=1 // loop_exit
      _
    %489 = vsyncpa [#allocation3], 1
    %s490 = scalar_lea.sflag [#allocation3], 1
    %491 = vsyncpa %s490, 1
    %492 = vsyncpa [#allocation6], 1
    %493 = vsyncpa [#allocation4], 1
    %s494 = scalar_lea.sflag [#allocation4], 1
    %495 = vsyncpa %s494, 1

</llo_original>
